<compile_context>
chip_gen: v6e
topology: v6e:2x2x1
jax: 0.10.0
libtpu: 0.0.40
codegen_flags: <defaults>
</compile_context>

<pallas_src>
import functools

import jax
import jax.numpy as jnp
from jax.experimental import pallas as pl
from jax.experimental.pallas import tpu as pltpu


_VMEM_LIMIT_BYTES = 48 * 1024 * 1024   # raised scoped limit (<= 64 MiB v7x physical)
_VMEM_BUDGET_BYTES = 36 * 1024 * 1024  # target double-buffered working set


def _round_up(x: int, m: int) -> int:
    return ((x + m - 1) // m) * m


def _pick_tile(padded_dim: int, desired: int, align: int) -> int:
    """Largest multiple of `align` that divides `padded_dim` and is <= desired."""
    desired = max(align, min(desired, padded_dim))
    best = align
    t = align
    while t <= desired:
        if padded_dim % t == 0:
            best = t
        t += align
    return best


def _working_set_bytes(tm, tn, tk, in_itemsize, out_itemsize=4):
    x_bytes = 2 * tm * tk * in_itemsize   # double-buffered x tile
    w_bytes = 2 * tk * tn * in_itemsize   # double-buffered weight tile
    o_bytes = 2 * tm * tn * out_itemsize  # double-buffered output tile
    acc_bytes = tm * tn * 4               # f32 accumulator scratch (3-D path only)
    b_bytes = 2 * tn * 4                  # bias row
    return x_bytes + w_bytes + o_bytes + acc_bytes + b_bytes


# ---------------------------------------------------------------------------
# Kernels
# ---------------------------------------------------------------------------
def _linear_kernel_noacc(x_ref, w_ref, b_ref, o_ref):
    # Fast path: full K resident in VMEM -> single MXU pass, no accumulator,
    # no per-K-step pipeline bookkeeping.
    o_ref[...] = (
        jnp.dot(x_ref[...], w_ref[...], preferred_element_type=jnp.float32)
        + b_ref[...]
    ).astype(o_ref.dtype)


def _linear_kernel_acc(x_ref, w_ref, b_ref, o_ref, acc_ref):
    # General path: K tiled, f32 VMEM accumulator persists across the K axis.
    k = pl.program_id(2)

    @pl.when(k == 0)
    def _():
        acc_ref[...] = jnp.zeros_like(acc_ref)

    acc_ref[...] += jnp.dot(
        x_ref[...], w_ref[...], preferred_element_type=jnp.float32
    )

    @pl.when(k == pl.num_programs(2) - 1)
    def _():
        o_ref[...] = (acc_ref[...] + b_ref[...]).astype(o_ref.dtype)


# ---------------------------------------------------------------------------
# One-time parameter prep (hoisted out of the per-call path)
# ---------------------------------------------------------------------------
def prepare_linear_params(weight, bias, compute_dtype=None):
    """Transpose W once to (D_in, D_out) so the kernel runs a plain A @ B,
    and pad both dims up to multiples of 128 (lane-dense, full blocks).

    weight: (D_out, D_in), bias: (D_out,)
    returns (w_t_padded: (K_p, N_p), b_padded: (1, N_p))
    """
    D_out, D_in = weight.shape
    K_p = _round_up(D_in, 128)
    N_p = _round_up(D_out, 128)
    w_t = jnp.transpose(weight)  # (D_in, D_out); one-time HBM cost
    w_t_p = jnp.pad(w_t, ((0, K_p - D_in), (0, N_p - D_out)))
    if compute_dtype is not None:
        w_t_p = w_t_p.astype(compute_dtype)
    b_p = jnp.pad(bias, (0, N_p - D_out)).astype(jnp.float32).reshape(1, N_p)
    return w_t_p, b_p


# ---------------------------------------------------------------------------
# Forward
# ---------------------------------------------------------------------------
@functools.partial(jax.jit, static_argnames=("d_out", "tm_max", "tn_max", "tk_max"))
def linear_forward(x, w_t_p, b_p, *, d_out, tm_max=512, tn_max=512, tk_max=2048):
    """y = x @ W.T + b with W pre-transposed/padded by prepare_linear_params.

    x:      (B, D_in)
    w_t_p:  (K_p, N_p)  pre-transposed, 128-padded weight
    b_p:    (1, N_p)    128-padded bias row
    returns (B, d_out)
    """
    B, D_in = x.shape
    K_p, N_p = w_t_p.shape
    out_dtype = x.dtype
    in_itemsize = jnp.dtype(w_t_p.dtype).itemsize

    # --- tile selection (trace-time Python) ---------------------------------
    # Padding is already 128-aligned; tiles are divisors of the padded dims so
    # the tile choice never inflates padding.
    tm = min(tm_max, _round_up(B, 8))
    tn = _pick_tile(N_p, tn_max, 128)
    tk = _pick_tile(K_p, tk_max, 128)

    # Keep the double-buffered working set inside the VMEM budget.
    while _working_set_bytes(tm, tn, tk, in_itemsize) > _VMEM_BUDGET_BYTES:
        if tk > 128:
            tk = _pick_tile(K_p, tk // 2, 128)
        elif tn > 128:
            tn = _pick_tile(N_p, tn // 2, 128)
        elif tm > 8:
            tm = max(8, tm // 2)
        else:
            break

    M_p = _round_up(B, tm)

    # Megacore: ensure the (parallel, parallel) grid has >= 2 blocks when the
    # shapes allow, so the second TensorCore (v7x) is not idle.
    if (M_p // tm) * (N_p // tn) == 1:
        if tn >= 256:
            tn = _pick_tile(N_p, tn // 2, 128)
        elif tm >= 16:
            tm = _round_up(tm // 2, 8)
            M_p = _round_up(B, tm)

    # --- per-call activation padding (parameters are already padded) --------
    x_p = x
    if x_p.dtype != w_t_p.dtype:
        x_p = x_p.astype(w_t_p.dtype)
    if (M_p, K_p) != (B, D_in):
        x_p = jnp.pad(x_p, ((0, M_p - B), (0, K_p - D_in)))

    grid_m = M_p // tm
    grid_n = N_p // tn
    grid_k = K_p // tk

    cost = pl.CostEstimate(
        flops=2 * M_p * K_p * N_p,
        transcendentals=0,
        bytes_accessed=(grid_n * M_p * K_p + grid_m * K_p * N_p) * in_itemsize
        + 4 * (M_p * N_p + N_p),
    )

    if grid_k == 1:
        # ----- no-reduction fast path: whole K in one block ------------------
        out_p = pl.pallas_call(
            _linear_kernel_noacc,
            out_shape=jax.ShapeDtypeStruct((M_p, N_p), out_dtype),
            grid=(grid_m, grid_n),
            in_specs=[
                pl.BlockSpec((tm, K_p), lambda i, j: (i, 0)),  # x row panel
                pl.BlockSpec((K_p, tn), lambda i, j: (0, j)),  # W.T col panel
                pl.BlockSpec((1, tn), lambda i, j: (0, j)),    # bias row
            ],
            out_specs=pl.BlockSpec((tm, tn), lambda i, j: (i, j)),
            compiler_params=pltpu.CompilerParams(
                dimension_semantics=("parallel", "parallel"),
                vmem_limit_bytes=_VMEM_LIMIT_BYTES,
            ),
            cost_estimate=cost,
        )(x_p, w_t_p, b_p)
    else:
        # ----- general K-tiled path with f32 accumulator ---------------------
        out_p = pl.pallas_call(
            _linear_kernel_acc,
            out_shape=jax.ShapeDtypeStruct((M_p, N_p), out_dtype),
            grid=(grid_m, grid_n, grid_k),
            in_specs=[
                pl.BlockSpec((tm, tk), lambda i, j, k: (i, k)),  # x
                pl.BlockSpec((tk, tn), lambda i, j, k: (k, j)),  # W.T
                pl.BlockSpec((1, tn), lambda i, j, k: (0, j)),   # bias row
            ],
            out_specs=pl.BlockSpec((tm, tn), lambda i, j, k: (i, j)),
            scratch_shapes=[pltpu.VMEM((tm, tn), jnp.float32)],
            compiler_params=pltpu.CompilerParams(
                dimension_semantics=("parallel", "parallel", "arbitrary"),
                vmem_limit_bytes=_VMEM_LIMIT_BYTES,
            ),
            cost_estimate=cost,
        )(x_p, w_t_p, b_p)

    return out_p[:B, :d_out]


if __name__ == "__main__":
    # Small shapes consistent with nn.Linear(input_dim, output_dim)
    batch, input_dim, output_dim = 8, 32, 16

    key = jax.random.PRNGKey(0)
    kx, kw, kb = jax.random.split(key, 3)

    x = jax.random.normal(kx, (batch, input_dim), dtype=jnp.float32)
    # Deterministic parameter init (mimics nn.Linear uniform(-1/sqrt(fan_in), +))
    bound = 1.0 / jnp.sqrt(jnp.float32(input_dim))
    weight = jax.random.uniform(
        kw, (output_dim, input_dim), dtype=jnp.float32, minval=-bound, maxval=bound
    )
    bias = jax.random.uniform(
        kb, (output_dim,), dtype=jnp.float32, minval=-bound, maxval=bound
    )

    # One-time parameter prep (transpose + pad), hoisted out of the call path.
    # For bf16 MXU throughput, pass compute_dtype=jnp.bfloat16 here.
    w_prep, b_prep = prepare_linear_params(weight, bias)

    y = linear_forward(x, w_prep, b_prep, d_out=output_dim)
    jax.block_until_ready(y)

    # Correctness check against plain-JAX reference
    y_ref = x @ weight.T + bias
    assert y.shape == (batch, output_dim)
    assert jnp.allclose(y, y_ref, atol=1e-5, rtol=1e-5)

    print("KERNEL_OK")
</pallas_src>

<mosaic_0001>
module attributes {stable_mosaic.version = 11 : i64} {
  func.func @_linear_kernel_noacc(%arg0: i32, %arg1: i32, %arg2: memref<8x128xf32, #tpu.memory_space<vmem>>, %arg3: memref<128x128xf32, #tpu.memory_space<vmem>>, %arg4: memref<1x128xf32, #tpu.memory_space<vmem>>, %arg5: memref<8x128xf32, #tpu.memory_space<vmem>>) attributes {dimension_semantics = [#tpu.dimension_semantics<parallel>, #tpu.dimension_semantics<parallel>], iteration_bounds = array<i64: 1, 1>, scalar_prefetch = 0 : i64, scratch_operands = 0 : i64, tpu.core_type = #tpu.core_type<tc>, window_params = [{transform_indices = @transform_0, window_bounds = array<i64: 8, 128>}, {transform_indices = @transform_1, window_bounds = array<i64: 128, 128>}, {transform_indices = @transform_2, window_bounds = array<i64: 1, 128>}, {transform_indices = @transform_3, window_bounds = array<i64: 8, 128>}]} {
    %c0 = arith.constant 0 : index
    %c0_0 = arith.constant 0 : index
    %0 = vector.load %arg2[%c0, %c0_0] : memref<8x128xf32, #tpu.memory_space<vmem>>, vector<8x128xf32>
    %c0_1 = arith.constant 0 : index
    %c0_2 = arith.constant 0 : index
    %1 = vector.load %arg3[%c0_1, %c0_2] : memref<128x128xf32, #tpu.memory_space<vmem>>, vector<128x128xf32>
    %cst = arith.constant dense<0.000000e+00> : vector<8x128xf32>
    %2 = tpu.matmul %0, %1, %cst {dimension_numbers = #tpu.dot_dimension_numbers<[1], [0], [0], [1], [0, 0, 1, 1], [], []>} : vector<8x128xf32>, vector<128x128xf32>, vector<8x128xf32> -> vector<8x128xf32>
    %c0_3 = arith.constant 0 : index
    %c0_4 = arith.constant 0 : index
    %3 = vector.load %arg4[%c0_3, %c0_4] : memref<1x128xf32, #tpu.memory_space<vmem>>, vector<1x128xf32>
    %4 = vector.broadcast %3 : vector<1x128xf32> to vector<8x128xf32>
    %5 = arith.addf %2, %4 : vector<8x128xf32>
    %c0_5 = arith.constant 0 : index
    %c0_6 = arith.constant 0 : index
    %6 = vector.load %arg5[%c0_5, %c0_6] : memref<8x128xf32, #tpu.memory_space<vmem>>, vector<8x128xf32>
    tpu.vector_store %arg5[%c0_5, %c0_6], %5 {strides = array<i32>} : memref<8x128xf32, #tpu.memory_space<vmem>>, vector<8x128xf32>,
    return
  }
  func.func @transform_0(%arg0: i32, %arg1: i32) -> (i32, i32) {
    %c0_i32 = arith.constant 0 : i32
    %c0_i32_0 = arith.constant 0 : i32
    return %arg0, %c0_i32 : i32, i32
  }
  func.func @transform_1(%arg0: i32, %arg1: i32) -> (i32, i32) {
    %c0_i32 = arith.constant 0 : i32
    %c0_i32_0 = arith.constant 0 : i32
    return %c0_i32, %arg1 : i32, i32
  }
  func.func @transform_2(%arg0: i32, %arg1: i32) -> (i32, i32) {
    %c0_i32 = arith.constant 0 : i32
    %c0_i32_0 = arith.constant 0 : i32
    return %c0_i32, %arg1 : i32, i32
  }
  func.func @transform_3(%arg0: i32, %arg1: i32) -> (i32, i32) {
    %c0_i32 = arith.constant 0 : i32
    return %arg0, %arg1 : i32, i32
  }
}

</mosaic_0001>

<llo_original>
// kernel: linear_forward.1
$region0: #{linear_forward.1}
  #allocation0 [shape = 'u32[]', space=smem, size = 0x4, offset = 0x4, fixed_abs, tag = 'smem constant byte address 0x4 - core index']
  #allocation1 [shape = 'u32[144,128]{1,0:T(1,128)}', space=vmem, size = 0x12000, scoped, tag = 'internal scratch']
  %s0 = inlined_call_operand.vmem [shape: f32[8,128], index: 0, kind: input, shape index: {}]
  %s1 = inlined_call_operand.hbm [shape: f32[128,128], index: 1, kind: input, shape index: {}]
  %s2 = inlined_call_operand.vmem [shape: f32[1,128], index: 2, kind: input, shape index: {}]
  %s3 = inlined_call_operand.hbm [shape: f32[8,128], index: 3, kind: output, shape index: {}]
  %s4 = sld [smem:[#allocation0]]
  $region26: #{linear_forward.1} parent=0
    _
  %s6 = ssub.s32 1, %s4
  %s7 = scalar_select 0, %s6, %s4
  $region1: #{linear_forward.1} parent=0
    #allocation2 [shape = 'u8[65536]{0}', space=vmem, size = 0x10000, scoped, tag = 'input window, operand 1, single buffered']
    #allocation3 [shape = 's32[1]{0}', space=sflag, size = 0x4, scoped, tag = 'scoped memory for linear_forward.1']
    #allocation4 [shape = 's32[1]{0}', space=sflag, size = 0x4, scoped, tag = 'scoped memory for linear_forward.1']
    #allocation5 [shape = 'u8[4096]{0}', space=vmem, size = 0x1000, scoped, tag = 'output window, operand 0, single buffered']
    %8 = vsyncpa [#allocation3], 0
    %9 = vsyncpa [#allocation4], 0
    // Predicated region
    $region2: #{linear_forward.1} parent=1 // pred_check
      _
    $region3: #{linear_forward.1} parent=1 // pred_check_branch
      %11 = sbr.rel (0) target = $region5
    $region4: #{linear_forward.1} parent=1 // pred_region
      _
    $region5: #{linear_forward.1} parent=1 // pred_fallthru
      _
    // Predicated region
    $region6: #{linear_forward.1} parent=1 // pred_check
      _
    $region7: #{linear_forward.1} parent=1 // pred_check_branch
      %13 = sbr.rel (0) target = $region9
    $region8: #{linear_forward.1} parent=1 // pred_region
      %s15 = ssub.s32 2048, 2048
      %16 = vsyncadd [#allocation3], %s15
      %s17 = sshll.u32 [#allocation2], 4
      %s18 = int_to_ptr.vmem [resolvable:$true] %s17
      %23 = dma.hbm_to_vmem [thread:$0]  %s1, 2048, %s18, [#allocation3], 128, 128, 8
    $region9: #{linear_forward.1} parent=1 // pred_fallthru
      _
    // Predicated region
    $region10: #{linear_forward.1} parent=1 // pred_check
      _
    $region11: #{linear_forward.1} parent=1 // pred_check_branch
      %25 = sbr.rel (0) target = $region13
    $region12: #{linear_forward.1} parent=1 // pred_region
      _
    $region13: #{linear_forward.1} parent=1 // pred_fallthru
      _
    // Predicated region
    $region14: #{linear_forward.1} parent=1 // pred_check
      _
    $region15: #{linear_forward.1} parent=1 // pred_check_branch
      %27 = sbr.rel (0) target = $region17
    $region16: #{linear_forward.1} parent=1 // pred_region
      %28 = dma.done [#allocation3], 2048
    $region17: #{linear_forward.1} parent=1 // pred_fallthru
      _
    %v29 = vld [vmem:[%s0] sm:$0xff]
    %v30 = vld [vmem:[#allocation2] sm:$0xff]
    %v31 = vld [vmem:[#allocation2 + $0x8] sm:$0xff]
    %v32 = vld [vmem:[#allocation2 + $0x10] sm:$0xff]
    %v33 = vld [vmem:[#allocation2 + $0x18] sm:$0xff]
    %v34 = vld [vmem:[#allocation2 + $0x20] sm:$0xff]
    %v35 = vld [vmem:[#allocation2 + $0x28] sm:$0xff]
    %v36 = vld [vmem:[#allocation2 + $0x30] sm:$0xff]
    %v37 = vld [vmem:[#allocation2 + $0x38] sm:$0xff]
    %v38 = vld [vmem:[#allocation2 + $0x40] sm:$0xff]
    %v39 = vld [vmem:[#allocation2 + $0x48] sm:$0xff]
    %v40 = vld [vmem:[#allocation2 + $0x50] sm:$0xff]
    %v41 = vld [vmem:[#allocation2 + $0x58] sm:$0xff]
    %v42 = vld [vmem:[#allocation2 + $0x60] sm:$0xff]
    %v43 = vld [vmem:[#allocation2 + $0x68] sm:$0xff]
    %v44 = vld [vmem:[#allocation2 + $0x70] sm:$0xff]
    %v45 = vld [vmem:[#allocation2 + $0x78] sm:$0xff]
    %v46 = vld [vmem:[%s2] sm:$0x1]
    %v48 = vlaneseq
    %v49 = vshrl.u32 %v48, 7
    %v50 = vsub.s32 0, %v49
    %v51 = vrot.slane %v46, %v50
    %53 = vmatprep.subr.mxu0 0.0
    %54 = vmatpush1.msra.mxu0 %v45
    %55 = vmatprep.subr.mxu0 0.0
    %56 = vmatpush1.msra.mxu0 %v44
    %57 = vmatprep.subr.mxu0 0.0
    %58 = vmatpush1.msra.mxu0 %v43
    %59 = vmatprep.subr.mxu0 0.0
    %60 = vmatpush1.msra.mxu0 %v42
    %61 = vmatprep.subr.mxu0 0.0
    %62 = vmatpush1.msra.mxu0 %v41
    %63 = vmatprep.subr.mxu0 0.0
    %64 = vmatpush1.msra.mxu0 %v40
    %65 = vmatprep.subr.mxu0 0.0
    %66 = vmatpush1.msra.mxu0 %v39
    %67 = vmatprep.subr.mxu0 0.0
    %68 = vmatpush1.msra.mxu0 %v38
    %69 = vmatprep.subr.mxu0 0.0
    %70 = vmatpush1.msra.mxu0 %v37
    %71 = vmatprep.subr.mxu0 0.0
    %72 = vmatpush1.msra.mxu0 %v36
    %73 = vmatprep.subr.mxu0 0.0
    %74 = vmatpush1.msra.mxu0 %v35
    %75 = vmatprep.subr.mxu0 0.0
    %76 = vmatpush1.msra.mxu0 %v34
    %77 = vmatprep.subr.mxu0 0.0
    %78 = vmatpush1.msra.mxu0 %v33
    %79 = vmatprep.subr.mxu0 0.0
    %80 = vmatpush1.msra.mxu0 %v32
    %81 = vmatprep.subr.mxu0 0.0
    %82 = vmatpush1.msra.mxu0 %v31
    %83 = vmatprep.subr.mxu0 0.0
    %84 = vmatpush1.msra.mxu0 %v30
    %85 = vmatprep.subr.mxu0 0.0
    %86 = vmatpush2.msra.mxu0 0.0
    %87 = vmatprep.subr.mxu0 0.0
    %88 = vmatpush2.msra.mxu0 0.0
    %89 = vmatprep.subr.mxu0 0.0
    %90 = vmatpush2.msra.mxu0 0.0
    %91 = vmatprep.subr.mxu0 0.0
    %92 = vmatpush2.msra.mxu0 0.0
    %93 = vmatprep.subr.mxu0 0.0
    %94 = vmatpush2.msra.mxu0 0.0
    %95 = vmatprep.subr.mxu0 0.0
    %96 = vmatpush2.msra.mxu0 0.0
    %97 = vmatprep.subr.mxu0 0.0
    %98 = vmatpush2.msra.mxu0 0.0
    %99 = vmatprep.subr.mxu0 0.0
    %100 = vmatpush2.msra.mxu0 0.0
    %101 = vmatprep.subr.mxu0 0.0
    %102 = vmatpush2.msra.mxu0 0.0
    %103 = vmatprep.subr.mxu0 0.0
    %104 = vmatpush2.msra.mxu0 0.0
    %105 = vmatprep.subr.mxu0 0.0
    %106 = vmatpush2.msra.mxu0 0.0
    %107 = vmatprep.subr.mxu0 0.0
    %108 = vmatpush2.msra.mxu0 0.0
    %109 = vmatprep.subr.mxu0 0.0
    %110 = vmatpush2.msra.mxu0 0.0
    %111 = vmatprep.subr.mxu0 0.0
    %112 = vmatpush2.msra.mxu0 0.0
    %113 = vmatprep.subr.mxu0 0.0
    %114 = vmatpush2.msra.mxu0 0.0
    %115 = vmatprep.subr.mxu0 0.0
    %116 = vmatpush2.msra.mxu0 0.0
    %117 = vmatprep.mubr.f32.mxu0 0.0
    %118 = vmatmul.mubr.f32.gmra.mxu0 %v29
    %v119 = vpop.f32.mrf.mxu0
    %v120 = vadd.f32 %v51, %v119
    %v121 = vpop.f32.mrf.mxu0
    %122 = vdwg.mxu0
    %123 = vst [vmem:[#allocation5] sm:$0xff] %v120
    // Predicated region
    $region18: #{linear_forward.1} parent=1 // pred_check
      _
    $region19: #{linear_forward.1} parent=1 // pred_check_branch
      %125 = sbr.rel (0) target = $region21
    $region20: #{linear_forward.1} parent=1 // pred_region
      %s127 = ssub.s32 128, 128
      %128 = vsyncadd [#allocation4], %s127
      %s130 = sshll.u32 [#allocation5], 4
      %s131 = int_to_ptr.vmem [resolvable:$true] %s130
      %133 = dma.vmem_to_hbm [thread:$0]  %s131, 128, %s3, [#allocation4]
    $region21: #{linear_forward.1} parent=1 // pred_fallthru
      _
    // Predicated region
    $region22: #{linear_forward.1} parent=1 // pred_check
      _
    $region23: #{linear_forward.1} parent=1 // pred_check_branch
      %135 = sbr.rel (0) target = $region25
    $region24: #{linear_forward.1} parent=1 // pred_region
      %136 = dma.done [#allocation4], 128
    $region25: #{linear_forward.1} parent=1 // pred_fallthru
      _
    %137 = vsyncpa [#allocation3], 1
    %138 = vsyncpa [#allocation4], 1

</llo_original>
